<compile_context>
chip_gen: v7x
topology: tpu7x:2x2x1
jax: 0.10.0
libtpu: 0.0.40
codegen_flags: <defaults>
</compile_context>

<pallas_src>
import math
from functools import partial

import jax
import jax.numpy as jnp
from jax import lax
from jax.experimental import pallas as pl
from jax.experimental.pallas import tpu as pltpu


# Contract the last dim of both operands: A @ B^T  (flash-attention style dim numbers).
_TRANS_B = (((1,), (1,)), ((), ()))


def aaf_fruits_kernel(s_ref, a_ref, ws_ref, wa_ref, be_ref, wp_ref, bp_ref, o_ref):
    # latent^T: (H, tile_b) -- batch on lanes, hidden on sublanes.
    latent = (
        lax.dot_general(ws_ref[...], s_ref[...], _TRANS_B,
                        preferred_element_type=jnp.float32)
        + lax.dot_general(wa_ref[...], a_ref[...], _TRANS_B,
                          preferred_element_type=jnp.float32)
        + be_ref[...]                                   # (H, 1) broadcasts over lanes
    )
    latent = jnp.maximum(latent, 0.0)                   # ReLU
    # fc_prob: (H, 1) weight column * latent, sublane reduce -> (1, tile_b).
    logits = jnp.sum(latent * wp_ref[...], axis=0, keepdims=True)
    o_ref[...] = logits + bp_ref[0, 0]                  # lane-dense (1, tile_b) store


def _round_up(x, m):
    return ((x + m - 1) // m) * m


@partial(jax.jit, static_argnames=("tile_b",))
def aaf_fruits_forward(states, actions, params, *, tile_b=512):
    """fc_prob(relu(encoder([states, actions])))[:, 0]  ->  (B,) logits."""
    w_s, w_a, b_enc, w_prob, b_prob = params
    B, S = states.shape
    A = actions.shape[1]
    H = w_s.shape[0]

    states = states.astype(jnp.float32)
    actions = actions.astype(jnp.float32)

    # Batch tile: multiple of 128 (lane width); shrink for small batches and pad
    # the batch up to a whole number of tiles (padded rows are sliced off below).
    tile_b = max(128, min(_round_up(tile_b, 128), _round_up(B, 128)))
    Bp = _round_up(B, tile_b)
    if Bp != B:
        pad = Bp - B
        states = jnp.pad(states, ((0, pad), (0, 0)))
        actions = jnp.pad(actions, ((0, pad), (0, 0)))

    out = pl.pallas_call(
        aaf_fruits_kernel,
        out_shape=jax.ShapeDtypeStruct((1, Bp), jnp.float32),
        grid_spec=pltpu.PrefetchScalarGridSpec(
            num_scalar_prefetch=0,
            grid=(Bp // tile_b,),
            in_specs=[
                pl.BlockSpec((tile_b, S), lambda i: (i, 0)),          # states slab
                pl.BlockSpec((tile_b, A), lambda i: (i, 0)),          # actions slab
                pl.BlockSpec((H, S), lambda i: (0, 0)),               # W_s (resident)
                pl.BlockSpec((H, A), lambda i: (0, 0)),               # W_a (resident)
                pl.BlockSpec((H, 1), lambda i: (0, 0)),               # encoder bias col
                pl.BlockSpec((H, 1), lambda i: (0, 0)),               # fc_prob weight col
                pl.BlockSpec(memory_space=pltpu.MemorySpace.SMEM),    # fc_prob bias (scalar)
            ],
            out_specs=pl.BlockSpec((1, tile_b), lambda i: (0, i)),    # lane-dense logits row
        ),
        compiler_params=pltpu.CompilerParams(
            dimension_semantics=("parallel",)),
    )(states, actions, w_s, w_a, b_enc, w_prob, b_prob)
    return out[0, :B]


def init_params(key, state_dim, action_dim, hidden):
    """Deterministic parameter init mirroring the module's __init__."""
    k_enc, k_prob = jax.random.split(key)
    d_in = state_dim + action_dim
    # Synthetic encoder Linear(d_in -> hidden); weight stored (out, in) like torch,
    # split into states / actions column blocks so the kernel needs no concat.
    w_enc = jax.random.normal(k_enc, (hidden, d_in), jnp.float32) / math.sqrt(d_in)
    w_s = jnp.asarray(w_enc[:, :state_dim])
    w_a = jnp.asarray(w_enc[:, state_dim:])
    b_enc = jnp.zeros((hidden, 1), jnp.float32)
    # fc_prob: kaiming_normal_(mode='fan_in', nonlinearity='relu') -> std = sqrt(2/H)
    std = math.sqrt(2.0 / hidden)
    w_prob = std * jax.random.normal(k_prob, (hidden, 1), jnp.float32)   # (1,H) weight, stored as a column
    b_prob = jnp.zeros((1, 1), jnp.float32)                              # nn.init.constant_(bias, 0)
    return w_s, w_a, b_enc, w_prob, b_prob


if __name__ == "__main__":
    B, STATE_DIM, ACTION_DIM, HIDDEN = 1024, 16, 8, 32   # grid = 2 tiles of 512 rows

    key = jax.random.PRNGKey(0)
    k_s, k_a, k_p = jax.random.split(key, 3)
    states = jax.random.normal(k_s, (B, STATE_DIM), jnp.float32)
    actions = jax.random.normal(k_a, (B, ACTION_DIM), jnp.float32)
    params = init_params(k_p, STATE_DIM, ACTION_DIM, HIDDEN)

    logits = aaf_fruits_forward(states, actions, params, tile_b=512)
    jax.block_until_ready(logits)

    # Plain-JAX reference of the same forward math.
    w_s, w_a, b_enc, w_prob, b_prob = params
    latent = jnp.maximum(states @ w_s.T + actions @ w_a.T + b_enc[:, 0], 0.0)
    ref = latent @ w_prob[:, 0] + b_prob[0, 0]

    assert logits.shape == (B,)
    assert jnp.allclose(logits, ref, atol=1e-4, rtol=1e-4), \
        float(jnp.max(jnp.abs(logits - ref)))

    print("KERNEL_OK")
</pallas_src>

<mosaic_0001>
module attributes {stable_mosaic.version = 11 : i64} {
  func.func @aaf_fruits_kernel(%arg0: i32, %arg1: memref<512x16xf32, #tpu.memory_space<vmem>>, %arg2: memref<512x8xf32, #tpu.memory_space<vmem>>, %arg3: memref<32x16xf32, #tpu.memory_space<vmem>>, %arg4: memref<32x8xf32, #tpu.memory_space<vmem>>, %arg5: memref<32x1xf32, #tpu.memory_space<vmem>>, %arg6: memref<32x1xf32, #tpu.memory_space<vmem>>, %arg7: memref<1x1xf32, #tpu.memory_space<smem>>, %arg8: memref<1x512xf32, #tpu.memory_space<vmem>>) attributes {dimension_semantics = [#tpu.dimension_semantics<parallel>], iteration_bounds = array<i64: 2>, scalar_prefetch = 0 : i64, scratch_operands = 0 : i64, tpu.core_type = #tpu.core_type<tc>, window_params = [{transform_indices = @transform_0, window_bounds = array<i64: 512, 16>}, {transform_indices = @transform_1, window_bounds = array<i64: 512, 8>}, {pipeline_mode = #tpu.pipeline_mode<synchronous>, transform_indices = @transform_2, window_bounds = array<i64: 32, 16>}, {pipeline_mode = #tpu.pipeline_mode<synchronous>, transform_indices = @transform_3, window_bounds = array<i64: 32, 8>}, {pipeline_mode = #tpu.pipeline_mode<synchronous>, transform_indices = @transform_4, window_bounds = array<i64: 32, 1>}, {pipeline_mode = #tpu.pipeline_mode<synchronous>, transform_indices = @transform_5, window_bounds = array<i64: 32, 1>}, {transform_indices = @transform_6, window_bounds = array<i64: 1, 1>}, {transform_indices = @transform_7, window_bounds = array<i64: 1, 512>}]} {
    %c0 = arith.constant 0 : index
    %c0_0 = arith.constant 0 : index
    %0 = vector.load %arg3[%c0, %c0_0] : memref<32x16xf32, #tpu.memory_space<vmem>>, vector<32x16xf32>
    %c0_1 = arith.constant 0 : index
    %c0_2 = arith.constant 0 : index
    %1 = vector.load %arg1[%c0_1, %c0_2] : memref<512x16xf32, #tpu.memory_space<vmem>>, vector<512x16xf32>
    %cst = arith.constant dense<0.000000e+00> : vector<32x512xf32>
    %2 = tpu.matmul %0, %1, %cst {dimension_numbers = #tpu.dot_dimension_numbers<[1], [1], [0], [0], [0, 0, 1, 0], [], []>} : vector<32x16xf32>, vector<512x16xf32>, vector<32x512xf32> -> vector<32x512xf32>
    %c0_3 = arith.constant 0 : index
    %c0_4 = arith.constant 0 : index
    %3 = vector.load %arg4[%c0_3, %c0_4] : memref<32x8xf32, #tpu.memory_space<vmem>>, vector<32x8xf32>
    %c0_5 = arith.constant 0 : index
    %c0_6 = arith.constant 0 : index
    %4 = vector.load %arg2[%c0_5, %c0_6] : memref<512x8xf32, #tpu.memory_space<vmem>>, vector<512x8xf32>
    %cst_7 = arith.constant dense<0.000000e+00> : vector<32x512xf32>
    %5 = tpu.matmul %3, %4, %cst_7 {dimension_numbers = #tpu.dot_dimension_numbers<[1], [1], [0], [0], [0, 0, 1, 0], [], []>} : vector<32x8xf32>, vector<512x8xf32>, vector<32x512xf32> -> vector<32x512xf32>
    %6 = arith.addf %2, %5 : vector<32x512xf32>
    %c0_8 = arith.constant 0 : index
    %c0_9 = arith.constant 0 : index
    %7 = vector.load %arg5[%c0_8, %c0_9] : memref<32x1xf32, #tpu.memory_space<vmem>>, vector<32x1xf32>
    %8 = vector.broadcast %7 : vector<32x1xf32> to vector<32x512xf32>
    %9 = arith.addf %6, %8 : vector<32x512xf32>
    %cst_10 = arith.constant 0.000000e+00 : f32
    %10 = vector.broadcast %cst_10 : f32 to vector<32x512xf32>
    %11 = arith.maximumf %9, %10 : vector<32x512xf32>
    %c0_11 = arith.constant 0 : index
    %c0_12 = arith.constant 0 : index
    %12 = vector.load %arg6[%c0_11, %c0_12] : memref<32x1xf32, #tpu.memory_space<vmem>>, vector<32x1xf32>
    %13 = vector.broadcast %12 : vector<32x1xf32> to vector<32x512xf32>
    %14 = arith.mulf %11, %13 : vector<32x512xf32>
    %cst_13 = arith.constant dense<0.000000e+00> : vector<512xf32>
    %15 = vector.multi_reduction <add>, %14, %cst_13 [0] : vector<32x512xf32> to vector<512xf32>
    %16 = vector.shape_cast %15 : vector<512xf32> to vector<1x512xf32>
    %c0_14 = arith.constant 0 : index
    %c0_15 = arith.constant 0 : index
    %17 = memref.load %arg7[%c0_14, %c0_15] : memref<1x1xf32, #tpu.memory_space<smem>>
    %18 = vector.broadcast %17 : f32 to vector<1x512xf32>
    %19 = arith.addf %16, %18 : vector<1x512xf32>
    %c0_16 = arith.constant 0 : index
    %c0_17 = arith.constant 0 : index
    %20 = vector.load %arg8[%c0_16, %c0_17] : memref<1x512xf32, #tpu.memory_space<vmem>>, vector<1x512xf32>
    tpu.vector_store %arg8[%c0_16, %c0_17], %19 {strides = array<i32>} : memref<1x512xf32, #tpu.memory_space<vmem>>, vector<1x512xf32>,
    return
  }
  func.func @transform_0(%arg0: i32) -> (i32, i32) {
    %c0_i32 = arith.constant 0 : i32
    %c0_i32_0 = arith.constant 0 : i32
    return %arg0, %c0_i32 : i32, i32
  }
  func.func @transform_1(%arg0: i32) -> (i32, i32) {
    %c0_i32 = arith.constant 0 : i32
    %c0_i32_0 = arith.constant 0 : i32
    return %arg0, %c0_i32 : i32, i32
  }
  func.func @transform_2(%arg0: i32) -> (i32, i32) {
    %c0_i32 = arith.constant 0 : i32
    %c0_i32_0 = arith.constant 0 : i32
    %c0_i32_1 = arith.constant 0 : i32
    return %c0_i32, %c0_i32_0 : i32, i32
  }
  func.func @transform_3(%arg0: i32) -> (i32, i32) {
    %c0_i32 = arith.constant 0 : i32
    %c0_i32_0 = arith.constant 0 : i32
    %c0_i32_1 = arith.constant 0 : i32
    return %c0_i32, %c0_i32_0 : i32, i32
  }
  func.func @transform_4(%arg0: i32) -> (i32, i32) {
    %c0_i32 = arith.constant 0 : i32
    %c0_i32_0 = arith.constant 0 : i32
    %c0_i32_1 = arith.constant 0 : i32
    return %c0_i32, %c0_i32_0 : i32, i32
  }
  func.func @transform_5(%arg0: i32) -> (i32, i32) {
    %c0_i32 = arith.constant 0 : i32
    %c0_i32_0 = arith.constant 0 : i32
    %c0_i32_1 = arith.constant 0 : i32
    return %c0_i32, %c0_i32_0 : i32, i32
  }
  func.func @transform_6(%arg0: i32) -> (i32, i32) {
    %c0_i32 = arith.constant 0 : i32
    %c0_i32_0 = arith.constant 0 : i32
    %c0_i32_1 = arith.constant 0 : i32
    return %c0_i32, %c0_i32_0 : i32, i32
  }
  func.func @transform_7(%arg0: i32) -> (i32, i32) {
    %c0_i32 = arith.constant 0 : i32
    %c0_i32_0 = arith.constant 0 : i32
    return %c0_i32, %arg0 : i32, i32
  }
}

</mosaic_0001>

<llo_original>
// kernel: aaf_fruits_forward.1
$region0: #{aaf_fruits_forward.1}
  #allocation0 [shape = 'u32[]', space=smem, size = 0x4, offset = 0x4, fixed_abs, tag = 'smem constant byte address 0x4 - core index']
  #allocation1 [shape = 'u32[144,128]{1,0:T(1,128)}', space=vmem, size = 0x12000, scoped, tag = 'internal scratch']
  #allocation2 [shape = 'f32[1,1]{1,0:T(1,128)S(6)}', space=smem, size = 0x200, scoped, tag = 'scoped memory for aaf_fruits_forward.1']
  %s0 = inlined_call_operand.vmem [shape: f32[1024,16], index: 0, kind: input, shape index: {}]
  %s1 = inlined_call_operand.vmem [shape: f32[1024,8], index: 1, kind: input, shape index: {}]
  %s2 = inlined_call_operand.vmem [shape: f32[32,16], index: 2, kind: input, shape index: {}]
  %s3 = inlined_call_operand.vmem [shape: f32[32,8], index: 3, kind: input, shape index: {}]
  %s4 = inlined_call_operand.vmem [shape: f32[32,1], index: 4, kind: input, shape index: {}]
  %s5 = inlined_call_operand.vmem [shape: f32[32,1], index: 5, kind: input, shape index: {}]
  %s6 = inlined_call_operand.<no memory space> [shape: f32[1,1], index: 6, kind: input, shape index: {}]
  %s7 = inlined_call_operand.hbm [shape: f32[1,1024], index: 7, kind: output, shape index: {}]
  %s8 = sld [smem:[#allocation0]]
  $region61: #{aaf_fruits_forward.1} parent=0
    _
  %s10 = ssub.s32 1, %s8
  %s11 = scalar_select 0, %s10, %s8
  %12 = sst [smem:[#allocation2]] %s6
  $region1: #{aaf_fruits_forward.1} parent=0
    #allocation3 [shape = 'u8[4096]{0}', space=vmem, size = 0x1000, scoped, tag = 'output window, operand 0']
    #allocation4 [shape = 's32[2]{0}', space=sflag, size = 0x8, scoped, tag = 'scoped memory for aaf_fruits_forward.1']
    %13 = vsyncpa [#allocation4], 0
    %s14 = scalar_lea.sflag [#allocation4], 1
    %15 = vsyncpa %s14, 0
    loop: start=0, step=1, limit=4
    $region2: #{aaf_fruits_forward.1} parent=1 // loop_pre_header
      _
    $region3: #{aaf_fruits_forward.1} parent=1 // loop_header
      %s17 = sphi 0, %s21
      %p18 = scmp.ge.s32.totalorder %s17, 4
      %s27 = sphi 0, %s29
      %s30 = sphi 0, %s27
      %s31 = sphi 0, %s30
      %s47 = sphi 0, %s31
      %s53 = sphi 0, %s55
      %s56 = sphi 0, %s53
      %s57 = sphi 0, %s56
      %s73 = sphi 0, %s57
      %s77 = sphi 0, %s77
      %s79 = sphi 0, %s77
      %s80 = sphi 0, %s79
      %s94 = sphi 0, %s80
      %s98 = sphi 0, %s98
      %s100 = sphi 0, %s98
      %s101 = sphi 0, %s100
      %s115 = sphi 0, %s101
      %s119 = sphi 0, %s119
      %s121 = sphi 0, %s119
      %s122 = sphi 0, %s121
      %s136 = sphi 0, %s122
      %s140 = sphi 0, %s140
      %s142 = sphi 0, %s140
      %s143 = sphi 0, %s142
      %s157 = sphi 0, %s143
      %s161 = sphi 0, %s161
      %s163 = sphi 0, %s161
      %s164 = sphi 0, %s163
      %s178 = sphi 0, %s164
      %s184 = sphi 0, %s186
      %s187 = sphi 0, %s184
      %s188 = sphi 0, %s187
      %s204 = sphi 0, %s188
    $region4: #{aaf_fruits_forward.1} parent=1 // loop_header_branch
      %20 = sbr.rel (%p18) target = $region8
    $region5: #{aaf_fruits_forward.1} parent=1 // loop_body
      %s22 = ssub.s32 %s17, 1
      %s23 = ssub.s32 %s17, 2
      %s24 = sadd.s32 %s17, 1
      %s25 = ssub.s32 %s17, %s24
      %p26 = scmp.eq.s32.totalorder %s25, 0
      %s28 = sadd.s32 %s27, 1
      %s29 = scalar_select %p26, %s27, %s28
      %p32 = pneg %p26
      %p33 = scmp.eq.s32.totalorder %s17, 1
      %p34 = por %p32, %p33
      %p35 = scmp.ne.s32.totalorder %s27, %s30
      %p36 = scmp.eq.s32.totalorder %s17, 0
      %p37 = por %p35, %p36
      %p38 = scmp.ne.s32.totalorder %s27, %s30
      %p39 = scmp.eq.s32.totalorder %s22, 1
      %p40 = por %p38, %p39
      %p41 = scmp.ne.s32.totalorder %s30, %s31
      %p42 = scmp.eq.s32.totalorder %s22, 0
      %p43 = por %p41, %p42
      %p44 = scmp.ne.s32.totalorder %s30, %s31
      %p45 = scmp.eq.s32.totalorder %s23, 1
      %p46 = por %p44, %p45
      %p48 = scmp.ne.s32.totalorder %s31, %s47
      %p49 = scmp.eq.s32.totalorder %s23, 0
      %p50 = por %p48, %p49
      %s51 = ssub.s32 %s17, %s24
      %p52 = scmp.eq.s32.totalorder %s51, 0
      %s54 = sadd.s32 %s53, 1
      %s55 = scalar_select %p52, %s53, %s54
      %p58 = pneg %p52
      %p59 = scmp.eq.s32.totalorder %s17, 1
      %p60 = por %p58, %p59
      %p61 = scmp.ne.s32.totalorder %s53, %s56
      %p62 = scmp.eq.s32.totalorder %s17, 0
      %p63 = por %p61, %p62
      %p64 = scmp.ne.s32.totalorder %s53, %s56
      %p65 = scmp.eq.s32.totalorder %s22, 1
      %p66 = por %p64, %p65
      %p67 = scmp.ne.s32.totalorder %s56, %s57
      %p68 = scmp.eq.s32.totalorder %s22, 0
      %p69 = por %p67, %p68
      %p70 = scmp.ne.s32.totalorder %s56, %s57
      %p71 = scmp.eq.s32.totalorder %s23, 1
      %p72 = por %p70, %p71
      %p74 = scmp.ne.s32.totalorder %s57, %s73
      %p75 = scmp.eq.s32.totalorder %s23, 0
      %p76 = por %p74, %p75
      %s78 = sadd.s32 %s77, 1
      %p81 = scmp.eq.s32.totalorder %s17, 1
      %p82 = scmp.ne.s32.totalorder %s77, %s79
      %p83 = scmp.eq.s32.totalorder %s17, 0
      %p84 = por %p82, %p83
      %p85 = scmp.ne.s32.totalorder %s77, %s79
      %p86 = scmp.eq.s32.totalorder %s22, 1
      %p87 = por %p85, %p86
      %p88 = scmp.ne.s32.totalorder %s79, %s80
      %p89 = scmp.eq.s32.totalorder %s22, 0
      %p90 = por %p88, %p89
      %p91 = scmp.ne.s32.totalorder %s79, %s80
      %p92 = scmp.eq.s32.totalorder %s23, 1
      %p93 = por %p91, %p92
      %p95 = scmp.ne.s32.totalorder %s80, %s94
      %p96 = scmp.eq.s32.totalorder %s23, 0
      %p97 = por %p95, %p96
      %s99 = sadd.s32 %s98, 1
      %p102 = scmp.eq.s32.totalorder %s17, 1
      %p103 = scmp.ne.s32.totalorder %s98, %s100
      %p104 = scmp.eq.s32.totalorder %s17, 0
      %p105 = por %p103, %p104
      %p106 = scmp.ne.s32.totalorder %s98, %s100
      %p107 = scmp.eq.s32.totalorder %s22, 1
      %p108 = por %p106, %p107
      %p109 = scmp.ne.s32.totalorder %s100, %s101
      %p110 = scmp.eq.s32.totalorder %s22, 0
      %p111 = por %p109, %p110
      %p112 = scmp.ne.s32.totalorder %s100, %s101
      %p113 = scmp.eq.s32.totalorder %s23, 1
      %p114 = por %p112, %p113
      %p116 = scmp.ne.s32.totalorder %s101, %s115
      %p117 = scmp.eq.s32.totalorder %s23, 0
      %p118 = por %p116, %p117
      %s120 = sadd.s32 %s119, 1
      %p123 = scmp.eq.s32.totalorder %s17, 1
      %p124 = scmp.ne.s32.totalorder %s119, %s121
      %p125 = scmp.eq.s32.totalorder %s17, 0
      %p126 = por %p124, %p125
      %p127 = scmp.ne.s32.totalorder %s119, %s121
      %p128 = scmp.eq.s32.totalorder %s22, 1
      %p129 = por %p127, %p128
      %p130 = scmp.ne.s32.totalorder %s121, %s122
      %p131 = scmp.eq.s32.totalorder %s22, 0
      %p132 = por %p130, %p131
      %p133 = scmp.ne.s32.totalorder %s121, %s122
      %p134 = scmp.eq.s32.totalorder %s23, 1
      %p135 = por %p133, %p134
      %p137 = scmp.ne.s32.totalorder %s122, %s136
      %p138 = scmp.eq.s32.totalorder %s23, 0
      %p139 = por %p137, %p138
      %s141 = sadd.s32 %s140, 1
      %p144 = scmp.eq.s32.totalorder %s17, 1
      %p145 = scmp.ne.s32.totalorder %s140, %s142
      %p146 = scmp.eq.s32.totalorder %s17, 0
      %p147 = por %p145, %p146
      %p148 = scmp.ne.s32.totalorder %s140, %s142
      %p149 = scmp.eq.s32.totalorder %s22, 1
      %p150 = por %p148, %p149
      %p151 = scmp.ne.s32.totalorder %s142, %s143
      %p152 = scmp.eq.s32.totalorder %s22, 0
      %p153 = por %p151, %p152
      %p154 = scmp.ne.s32.totalorder %s142, %s143
      %p155 = scmp.eq.s32.totalorder %s23, 1
      %p156 = por %p154, %p155
      %p158 = scmp.ne.s32.totalorder %s143, %s157
      %p159 = scmp.eq.s32.totalorder %s23, 0
      %p160 = por %p158, %p159
      %s162 = sadd.s32 %s161, 1
      %p165 = scmp.eq.s32.totalorder %s17, 1
      %p166 = scmp.ne.s32.totalorder %s161, %s163
      %p167 = scmp.eq.s32.totalorder %s17, 0
      %p168 = por %p166, %p167
      %p169 = scmp.ne.s32.totalorder %s161, %s163
      %p170 = scmp.eq.s32.totalorder %s22, 1
      %p171 = por %p169, %p170
      %p172 = scmp.ne.s32.totalorder %s163, %s164
      %p173 = scmp.eq.s32.totalorder %s22, 0
      %p174 = por %p172, %p173
      %p175 = scmp.ne.s32.totalorder %s163, %s164
      %p176 = scmp.eq.s32.totalorder %s23, 1
      %p177 = por %p175, %p176
      %p179 = scmp.ne.s32.totalorder %s164, %s178
      %p180 = scmp.eq.s32.totalorder %s23, 0
      %p181 = por %p179, %p180
      %s182 = ssub.s32 %s17, %s24
      %p183 = scmp.eq.s32.totalorder %s182, 0
      %s185 = sadd.s32 %s184, 1
      %s186 = scalar_select %p183, %s184, %s185
      %p189 = pneg %p183
      %p190 = scmp.eq.s32.totalorder %s17, 1
      %p191 = por %p189, %p190
      %p192 = scmp.ne.s32.totalorder %s184, %s187
      %p193 = scmp.eq.s32.totalorder %s17, 0
      %p194 = por %p192, %p193
      %p195 = scmp.ne.s32.totalorder %s184, %s187
      %p196 = scmp.eq.s32.totalorder %s22, 1
      %p197 = por %p195, %p196
      %p198 = scmp.ne.s32.totalorder %s187, %s188
      %p199 = scmp.eq.s32.totalorder %s22, 0
      %p200 = por %p198, %p199
      %p201 = scmp.ne.s32.totalorder %s187, %s188
      %p202 = scmp.eq.s32.totalorder %s23, 1
      %p203 = por %p201, %p202
      %p205 = scmp.ne.s32.totalorder %s188, %s204
      %p206 = scmp.eq.s32.totalorder %s23, 0
      %p207 = por %p205, %p206
      %p208 = scmp.le.s32.totalorder 1, %s17
      %p209 = scmp.lt.s32.totalorder %s17, 3
      %p210 = pnand %p208, %p209
      %p211 = pneg %p210
      // Predicated region
      $region9: #{aaf_fruits_forward.1} parent=5 // pred_check
        _
      $region10: #{aaf_fruits_forward.1} parent=5 // pred_check_branch
        %213 = sbr.rel (%p210) target = $region12
      $region11: #{aaf_fruits_forward.1} parent=5 // pred_region
        %s214 = ssub.s32 %s17, 1
        // Predicated region
        $region13: #{aaf_fruits_forward.1} parent=11 // pred_check
          %p215 = pneg %p90
        $region14: #{aaf_fruits_forward.1} parent=11 // pred_check_branch
          %217 = sbr.rel (%p215) target = $region16
        $region15: #{aaf_fruits_forward.1} parent=11 // pred_region
          _
        $region16: #{aaf_fruits_forward.1} parent=11 // pred_fallthru
          _
        // Predicated region
        $region17: #{aaf_fruits_forward.1} parent=11 // pred_check
          %p218 = pneg %p111
        $region18: #{aaf_fruits_forward.1} parent=11 // pred_check_branch
          %220 = sbr.rel (%p218) target = $region20
        $region19: #{aaf_fruits_forward.1} parent=11 // pred_region
          _
        $region20: #{aaf_fruits_forward.1} parent=11 // pred_fallthru
          _
        // Predicated region
        $region21: #{aaf_fruits_forward.1} parent=11 // pred_check
          %p221 = pneg %p132
        $region22: #{aaf_fruits_forward.1} parent=11 // pred_check_branch
          %223 = sbr.rel (%p221) target = $region24
        $region23: #{aaf_fruits_forward.1} parent=11 // pred_region
          _
        $region24: #{aaf_fruits_forward.1} parent=11 // pred_fallthru
          _
        // Predicated region
        $region25: #{aaf_fruits_forward.1} parent=11 // pred_check
          %p224 = pneg %p153
        $region26: #{aaf_fruits_forward.1} parent=11 // pred_check_branch
          %226 = sbr.rel (%p224) target = $region28
        $region27: #{aaf_fruits_forward.1} parent=11 // pred_region
          _
        $region28: #{aaf_fruits_forward.1} parent=11 // pred_fallthru
          _
        // Predicated region
        $region29: #{aaf_fruits_forward.1} parent=11 // pred_check
          %p227 = pneg %p174
        $region30: #{aaf_fruits_forward.1} parent=11 // pred_check_branch
          %229 = sbr.rel (%p227) target = $region32
        $region31: #{aaf_fruits_forward.1} parent=11 // pred_region
          _
        $region32: #{aaf_fruits_forward.1} parent=11 // pred_fallthru
          _
      $region12: #{aaf_fruits_forward.1} parent=5 // pred_fallthru
        _
      %p230 = scmp.lt.s32.totalorder %s17, 2
      // Predicated region
      $region33: #{aaf_fruits_forward.1} parent=5 // pred_check
        %p231 = pneg %p230
      $region34: #{aaf_fruits_forward.1} parent=5 // pred_check_branch
        %233 = sbr.rel (%p231) target = $region36
      $region35: #{aaf_fruits_forward.1} parent=5 // pred_region
        // Predicated region
        $region37: #{aaf_fruits_forward.1} parent=35 // pred_check
          %p234 = pneg %p37
        $region38: #{aaf_fruits_forward.1} parent=35 // pred_check_branch
          %236 = sbr.rel (%p234) target = $region40
        $region39: #{aaf_fruits_forward.1} parent=35 // pred_region
          %s237 = smul.u32 64, %s17
          %p238 = scmp.lt.s32.totalorder %s237, 127
          %s239 = scalar_select %p238, %s237, 127
          %s240 = smul.addr %s239, 8
          %s241 = scalar_lea.vmem %s0, %s240
          %s242 = smul.u32 64, %s17
        $region40: #{aaf_fruits_forward.1} parent=35 // pred_fallthru
          _
        // Predicated region
        $region41: #{aaf_fruits_forward.1} parent=35 // pred_check
          %p243 = pneg %p63
        $region42: #{aaf_fruits_forward.1} parent=35 // pred_check_branch
          %245 = sbr.rel (%p243) target = $region44
        $region43: #{aaf_fruits_forward.1} parent=35 // pred_region
          %s246 = smul.u32 64, %s17
          %p247 = scmp.lt.s32.totalorder %s246, 127
          %s248 = scalar_select %p247, %s246, 127
          %s249 = smul.addr %s248, 8
          %s250 = scalar_lea.vmem %s1, %s249
          %s251 = smul.u32 64, %s17
        $region44: #{aaf_fruits_forward.1} parent=35 // pred_fallthru
          _
      $region36: #{aaf_fruits_forward.1} parent=5 // pred_fallthru
        _
      %p252 = scmp.le.s32.totalorder 1, %s17
      %p253 = scmp.lt.s32.totalorder %s17, 3
      %p254 = pnand %p252, %p253
      %p255 = pneg %p254
      // Predicated region
      $region45: #{aaf_fruits_forward.1} parent=5 // pred_check
        _
      $region46: #{aaf_fruits_forward.1} parent=5 // pred_check_branch
        %257 = sbr.rel (%p254) target = $region48
      $region47: #{aaf_fruits_forward.1} parent=5 // pred_region
        %s258 = ssub.s32 %s17, 1
        %s259 = smul.u32 64, %s22
        %p260 = scmp.lt.s32.totalorder %s259, 127
        %s261 = scalar_select %p260, %s259, 127
        %s262 = smul.addr %s261, 8
        %s263 = scalar_lea.vmem %s0, %s262
        %p264 = pneg %p43
        %p265 = pneg %p40
        %s266 = smul.u32 64, %s22
        %p267 = scmp.lt.s32.totalorder %s266, 127
        %s268 = scalar_select %p267, %s266, 127
        %s269 = smul.addr %s268, 8
        %s270 = scalar_lea.vmem %s1, %s269
        %p271 = pneg %p69
        %p272 = pneg %p66
        %p273 = pneg %p90
        %p274 = pneg %p87
        %p275 = pneg %p111
        %p276 = pneg %p108
        %p277 = pneg %p132
        %p278 = pneg %p129
        %p279 = pneg %p153
        %p280 = pneg %p150
        %p281 = pneg %p174
        %p282 = pneg %p171
        %p283 = pneg %p200
        %p284 = pneg %p197
        %s285 = sand.u32 %s187, 1
        %s286 = scalar_lea.sflag [#allocation4], %s285
        %s287 = sand.u32 %s187, 1
        %s288 = smul.addr %s287, 4
        %s289 = scalar_lea.vmem [#allocation3], %s288
        %s290 = smul.u32 64, %s22
        %p291 = scmp.lt.s32.totalorder %s290, 127
        %s292 = scalar_select %p291, %s290, 127
        %s293 = smul.addr %s292, 8
        %s294 = scalar_lea.vmem %s0, %s293
        %s295 = smul.u32 64, %s22
        %s296 = smul.u32 64, %s22
        %p297 = scmp.lt.s32.totalorder %s296, 127
        %s298 = scalar_select %p297, %s296, 127
        %s299 = smul.addr %s298, 8
        %s300 = scalar_lea.vmem %s1, %s299
        %s301 = smul.u32 64, %s22
        %s302 = smul.u32 4, %s22
        %v303 = vld [vmem:[%s2] sm:$0xff]
        %v304 = vld [vmem:[%s2 + $0x8] sm:$0xff]
        %v305 = vld [vmem:[%s2 + $0x10] sm:$0xff]
        %v306 = vld [vmem:[%s2 + $0x18] sm:$0xff]
        %v307 = vld [vmem:[%s294] sm:$0xff]
        %v308 = vld [vmem:[%s294 + $0x8] sm:$0xff]
        %v309 = vld [vmem:[%s294 + $0x10] sm:$0xff]
        %v310 = vld [vmem:[%s294 + $0x18] sm:$0xff]
        %v311 = vld [vmem:[%s294 + $0x20] sm:$0xff]
        %v312 = vld [vmem:[%s294 + $0x28] sm:$0xff]
        %v313 = vld [vmem:[%s294 + $0x30] sm:$0xff]
        %v314 = vld [vmem:[%s294 + $0x38] sm:$0xff]
        %v315 = vld [vmem:[%s294 + $0x40] sm:$0xff]
        %v316 = vld [vmem:[%s294 + $0x48] sm:$0xff]
        %v317 = vld [vmem:[%s294 + $0x50] sm:$0xff]
        %v318 = vld [vmem:[%s294 + $0x58] sm:$0xff]
        %v319 = vld [vmem:[%s294 + $0x60] sm:$0xff]
        %v320 = vld [vmem:[%s294 + $0x68] sm:$0xff]
        %v321 = vld [vmem:[%s294 + $0x70] sm:$0xff]
        %v322 = vld [vmem:[%s294 + $0x78] sm:$0xff]
        %v323 = vld [vmem:[%s294 + $0x80] sm:$0xff]
        %v324 = vld [vmem:[%s294 + $0x88] sm:$0xff]
        %v325 = vld [vmem:[%s294 + $0x90] sm:$0xff]
        %v326 = vld [vmem:[%s294 + $0x98] sm:$0xff]
        %v327 = vld [vmem:[%s294 + $0xa0] sm:$0xff]
        %v328 = vld [vmem:[%s294 + $0xa8] sm:$0xff]
        %v329 = vld [vmem:[%s294 + $0xb0] sm:$0xff]
        %v330 = vld [vmem:[%s294 + $0xb8] sm:$0xff]
        %v331 = vld [vmem:[%s294 + $0xc0] sm:$0xff]
        %v332 = vld [vmem:[%s294 + $0xc8] sm:$0xff]
        %v333 = vld [vmem:[%s294 + $0xd0] sm:$0xff]
        %v334 = vld [vmem:[%s294 + $0xd8] sm:$0xff]
        %v335 = vld [vmem:[%s294 + $0xe0] sm:$0xff]
        %v336 = vld [vmem:[%s294 + $0xe8] sm:$0xff]
        %v337 = vld [vmem:[%s294 + $0xf0] sm:$0xff]
        %v338 = vld [vmem:[%s294 + $0xf8] sm:$0xff]
        %v339 = vld [vmem:[%s294 + $0x100] sm:$0xff]
        %v340 = vld [vmem:[%s294 + $0x108] sm:$0xff]
        %v341 = vld [vmem:[%s294 + $0x110] sm:$0xff]
        %v342 = vld [vmem:[%s294 + $0x118] sm:$0xff]
        %v343 = vld [vmem:[%s294 + $0x120] sm:$0xff]
        %v344 = vld [vmem:[%s294 + $0x128] sm:$0xff]
        %v345 = vld [vmem:[%s294 + $0x130] sm:$0xff]
        %v346 = vld [vmem:[%s294 + $0x138] sm:$0xff]
        %v347 = vld [vmem:[%s294 + $0x140] sm:$0xff]
        %v348 = vld [vmem:[%s294 + $0x148] sm:$0xff]
        %v349 = vld [vmem:[%s294 + $0x150] sm:$0xff]
        %v350 = vld [vmem:[%s294 + $0x158] sm:$0xff]
        %v351 = vld [vmem:[%s294 + $0x160] sm:$0xff]
        %v352 = vld [vmem:[%s294 + $0x168] sm:$0xff]
        %v353 = vld [vmem:[%s294 + $0x170] sm:$0xff]
        %v354 = vld [vmem:[%s294 + $0x178] sm:$0xff]
        %v355 = vld [vmem:[%s294 + $0x180] sm:$0xff]
        %v356 = vld [vmem:[%s294 + $0x188] sm:$0xff]
        %v357 = vld [vmem:[%s294 + $0x190] sm:$0xff]
        %v358 = vld [vmem:[%s294 + $0x198] sm:$0xff]
        %v359 = vld [vmem:[%s294 + $0x1a0] sm:$0xff]
        %v360 = vld [vmem:[%s294 + $0x1a8] sm:$0xff]
        %v361 = vld [vmem:[%s294 + $0x1b0] sm:$0xff]
        %v362 = vld [vmem:[%s294 + $0x1b8] sm:$0xff]
        %v363 = vld [vmem:[%s294 + $0x1c0] sm:$0xff]
        %v364 = vld [vmem:[%s294 + $0x1c8] sm:$0xff]
        %v365 = vld [vmem:[%s294 + $0x1d0] sm:$0xff]
        %v366 = vld [vmem:[%s294 + $0x1d8] sm:$0xff]
        %v367 = vld [vmem:[%s294 + $0x1e0] sm:$0xff]
        %v368 = vld [vmem:[%s294 + $0x1e8] sm:$0xff]
        %v369 = vld [vmem:[%s294 + $0x1f0] sm:$0xff]
        %v370 = vld [vmem:[%s294 + $0x1f8] sm:$0xff]
        %v371 = vld [vmem:[%s3] sm:$0xff]
        %v372 = vld [vmem:[%s3 + $0x8] sm:$0xff]
        %v373 = vld [vmem:[%s3 + $0x10] sm:$0xff]
        %v374 = vld [vmem:[%s3 + $0x18] sm:$0xff]
        %v375 = vld [vmem:[%s300] sm:$0xff]
        %v376 = vld [vmem:[%s300 + $0x8] sm:$0xff]
        %v377 = vld [vmem:[%s300 + $0x10] sm:$0xff]
        %v378 = vld [vmem:[%s300 + $0x18] sm:$0xff]
        %v379 = vld [vmem:[%s300 + $0x20] sm:$0xff]
        %v380 = vld [vmem:[%s300 + $0x28] sm:$0xff]
        %v381 = vld [vmem:[%s300 + $0x30] sm:$0xff]
        %v382 = vld [vmem:[%s300 + $0x38] sm:$0xff]
        %v383 = vld [vmem:[%s300 + $0x40] sm:$0xff]
        %v384 = vld [vmem:[%s300 + $0x48] sm:$0xff]
        %v385 = vld [vmem:[%s300 + $0x50] sm:$0xff]
        %v386 = vld [vmem:[%s300 + $0x58] sm:$0xff]
        %v387 = vld [vmem:[%s300 + $0x60] sm:$0xff]
        %v388 = vld [vmem:[%s300 + $0x68] sm:$0xff]
        %v389 = vld [vmem:[%s300 + $0x70] sm:$0xff]
        %v390 = vld [vmem:[%s300 + $0x78] sm:$0xff]
        %v391 = vld [vmem:[%s300 + $0x80] sm:$0xff]
        %v392 = vld [vmem:[%s300 + $0x88] sm:$0xff]
        %v393 = vld [vmem:[%s300 + $0x90] sm:$0xff]
        %v394 = vld [vmem:[%s300 + $0x98] sm:$0xff]
        %v395 = vld [vmem:[%s300 + $0xa0] sm:$0xff]
        %v396 = vld [vmem:[%s300 + $0xa8] sm:$0xff]
        %v397 = vld [vmem:[%s300 + $0xb0] sm:$0xff]
        %v398 = vld [vmem:[%s300 + $0xb8] sm:$0xff]
        %v399 = vld [vmem:[%s300 + $0xc0] sm:$0xff]
        %v400 = vld [vmem:[%s300 + $0xc8] sm:$0xff]
        %v401 = vld [vmem:[%s300 + $0xd0] sm:$0xff]
        %v402 = vld [vmem:[%s300 + $0xd8] sm:$0xff]
        %v403 = vld [vmem:[%s300 + $0xe0] sm:$0xff]
        %v404 = vld [vmem:[%s300 + $0xe8] sm:$0xff]
        %v405 = vld [vmem:[%s300 + $0xf0] sm:$0xff]
        %v406 = vld [vmem:[%s300 + $0xf8] sm:$0xff]
        %v407 = vld [vmem:[%s300 + $0x100] sm:$0xff]
        %v408 = vld [vmem:[%s300 + $0x108] sm:$0xff]
        %v409 = vld [vmem:[%s300 + $0x110] sm:$0xff]
        %v410 = vld [vmem:[%s300 + $0x118] sm:$0xff]
        %v411 = vld [vmem:[%s300 + $0x120] sm:$0xff]
        %v412 = vld [vmem:[%s300 + $0x128] sm:$0xff]
        %v413 = vld [vmem:[%s300 + $0x130] sm:$0xff]
        %v414 = vld [vmem:[%s300 + $0x138] sm:$0xff]
        %v415 = vld [vmem:[%s300 + $0x140] sm:$0xff]
        %v416 = vld [vmem:[%s300 + $0x148] sm:$0xff]
        %v417 = vld [vmem:[%s300 + $0x150] sm:$0xff]
        %v418 = vld [vmem:[%s300 + $0x158] sm:$0xff]
        %v419 = vld [vmem:[%s300 + $0x160] sm:$0xff]
        %v420 = vld [vmem:[%s300 + $0x168] sm:$0xff]
        %v421 = vld [vmem:[%s300 + $0x170] sm:$0xff]
        %v422 = vld [vmem:[%s300 + $0x178] sm:$0xff]
        %v423 = vld [vmem:[%s300 + $0x180] sm:$0xff]
        %v424 = vld [vmem:[%s300 + $0x188] sm:$0xff]
        %v425 = vld [vmem:[%s300 + $0x190] sm:$0xff]
        %v426 = vld [vmem:[%s300 + $0x198] sm:$0xff]
        %v427 = vld [vmem:[%s300 + $0x1a0] sm:$0xff]
        %v428 = vld [vmem:[%s300 + $0x1a8] sm:$0xff]
        %v429 = vld [vmem:[%s300 + $0x1b0] sm:$0xff]
        %v430 = vld [vmem:[%s300 + $0x1b8] sm:$0xff]
        %v431 = vld [vmem:[%s300 + $0x1c0] sm:$0xff]
        %v432 = vld [vmem:[%s300 + $0x1c8] sm:$0xff]
        %v433 = vld [vmem:[%s300 + $0x1d0] sm:$0xff]
        %v434 = vld [vmem:[%s300 + $0x1d8] sm:$0xff]
        %v435 = vld [vmem:[%s300 + $0x1e0] sm:$0xff]
        %v436 = vld [vmem:[%s300 + $0x1e8] sm:$0xff]
        %v437 = vld [vmem:[%s300 + $0x1f0] sm:$0xff]
        %v438 = vld [vmem:[%s300 + $0x1f8] sm:$0xff]
        %vm439 = vcmask 64512
        %v441 = vsel %vm439, %v371, 0
        %v444 = vsel %vm439, %v372, 0
        %v447 = vsel %vm439, %v373, 0
        %v450 = vsel %vm439, %v374, 0
        %v453 = vsel %vm439, %v375, 0
        %v456 = vsel %vm439, %v376, 0
        %v459 = vsel %vm439, %v377, 0
        %v462 = vsel %vm439, %v378, 0
        %v465 = vsel %vm439, %v379, 0
        %v468 = vsel %vm439, %v380, 0
        %v471 = vsel %vm439, %v381, 0
        %v474 = vsel %vm439, %v382, 0
        %v477 = vsel %vm439, %v383, 0
        %v480 = vsel %vm439, %v384, 0
        %v483 = vsel %vm439, %v385, 0
        %v486 = vsel %vm439, %v386, 0
        %v489 = vsel %vm439, %v387, 0
        %v492 = vsel %vm439, %v388, 0
        %v495 = vsel %vm439, %v389, 0
        %v498 = vsel %vm439, %v390, 0
        %v501 = vsel %vm439, %v391, 0
        %v504 = vsel %vm439, %v392, 0
        %v507 = vsel %vm439, %v393, 0
        %v510 = vsel %vm439, %v394, 0
        %v513 = vsel %vm439, %v395, 0
        %v516 = vsel %vm439, %v396, 0
        %v519 = vsel %vm439, %v397, 0
        %v522 = vsel %vm439, %v398, 0
        %v525 = vsel %vm439, %v399, 0
        %v528 = vsel %vm439, %v400, 0
        %v531 = vsel %vm439, %v401, 0
        %v534 = vsel %vm439, %v402, 0
        %v537 = vsel %vm439, %v403, 0
        %v540 = vsel %vm439, %v404, 0
        %v543 = vsel %vm439, %v405, 0
        %v546 = vsel %vm439, %v406, 0
        %v549 = vsel %vm439, %v407, 0
        %v552 = vsel %vm439, %v408, 0
        %v555 = vsel %vm439, %v409, 0
        %v558 = vsel %vm439, %v410, 0
        %v561 = vsel %vm439, %v411, 0
        %v564 = vsel %vm439, %v412, 0
        %v567 = vsel %vm439, %v413, 0
        %v570 = vsel %vm439, %v414, 0
        %v573 = vsel %vm439, %v415, 0
        %v576 = vsel %vm439, %v416, 0
        %v579 = vsel %vm439, %v417, 0
        %v582 = vsel %vm439, %v418, 0
        %v585 = vsel %vm439, %v419, 0
        %v588 = vsel %vm439, %v420, 0
        %v591 = vsel %vm439, %v421, 0
        %v594 = vsel %vm439, %v422, 0
        %v597 = vsel %vm439, %v423, 0
        %v600 = vsel %vm439, %v424, 0
        %v603 = vsel %vm439, %v425, 0
        %v606 = vsel %vm439, %v426, 0
        %v609 = vsel %vm439, %v427, 0
        %v612 = vsel %vm439, %v428, 0
        %v615 = vsel %vm439, %v429, 0
        %v618 = vsel %vm439, %v430, 0
        %v621 = vsel %vm439, %v431, 0
        %v624 = vsel %vm439, %v432, 0
        %v627 = vsel %vm439, %v433, 0
        %v630 = vsel %vm439, %v434, 0
        %v633 = vsel %vm439, %v435, 0
        %v636 = vsel %vm439, %v436, 0
        %v639 = vsel %vm439, %v437, 0
        %v642 = vsel %vm439, %v438, 0
        %644 = vmatprep.subr.mxu0 0.0
        %645 = vmatpush1.xpose.msra.mxu0 %v453
        %646 = vmatprep.subr.mxu0 0.0
        %647 = vmatpush1.xpose.msra.mxu0 %v456
        %648 = vmatprep.subr.mxu0 0.0
        %649 = vmatpush1.xpose.msra.mxu0 %v459
        %650 = vmatprep.subr.mxu0 0.0
        %651 = vmatpush1.xpose.msra.mxu0 %v462
        %652 = vmatprep.subr.mxu0 0.0
        %653 = vmatpush1.xpose.msra.mxu0 %v465
        %654 = vmatprep.subr.mxu0 0.0
        %655 = vmatpush1.xpose.msra.mxu0 %v468
        %656 = vmatprep.subr.mxu0 0.0
        %657 = vmatpush1.xpose.msra.mxu0 %v471
        %658 = vmatprep.subr.mxu0 0.0
        %659 = vmatpush1.xpose.msra.mxu0 %v474
        %660 = vmatprep.subr.mxu0 0.0
        %661 = vmatpush1.xpose.msra.mxu0 %v477
        %662 = vmatprep.subr.mxu0 0.0
        %663 = vmatpush1.xpose.msra.mxu0 %v480
        %664 = vmatprep.subr.mxu0 0.0
        %665 = vmatpush1.xpose.msra.mxu0 %v483
        %666 = vmatprep.subr.mxu0 0.0
        %667 = vmatpush1.xpose.msra.mxu0 %v486
        %668 = vmatprep.subr.mxu0 0.0
        %669 = vmatpush1.xpose.msra.mxu0 %v489
        %670 = vmatprep.subr.mxu0 0.0
        %671 = vmatpush1.xpose.msra.mxu0 %v492
        %672 = vmatprep.subr.mxu0 0.0
        %673 = vmatpush1.xpose.msra.mxu0 %v495
        %674 = vmatprep.subr.mxu0 0.0
        %675 = vmatpush1.xpose.msra.mxu0 %v498
        %676 = vmatprep.subr.mxu0 0.0
        %677 = vmatpush1.xpose.msra.mxu0 %v501
        %678 = vmatprep.subr.mxu0 0.0
        %679 = vmatpush1.xpose.msra.mxu0 %v504
        %680 = vmatprep.subr.mxu0 0.0
        %681 = vmatpush1.xpose.msra.mxu0 %v507
        %682 = vmatprep.subr.mxu0 0.0
        %683 = vmatpush1.xpose.msra.mxu0 %v510
        %684 = vmatprep.subr.mxu0 0.0
        %685 = vmatpush1.xpose.msra.mxu0 %v513
        %686 = vmatprep.subr.mxu0 0.0
        %687 = vmatpush1.xpose.msra.mxu0 %v516
        %688 = vmatprep.subr.mxu0 0.0
        %689 = vmatpush1.xpose.msra.mxu0 %v519
        %690 = vmatprep.subr.mxu0 0.0
        %691 = vmatpush1.xpose.msra.mxu0 %v522
        %692 = vmatprep.subr.mxu0 0.0
        %693 = vmatpush1.xpose.msra.mxu0 %v525
        %694 = vmatprep.subr.mxu0 0.0
        %695 = vmatpush1.xpose.msra.mxu0 %v528
        %696 = vmatprep.subr.mxu0 0.0
        %697 = vmatpush1.xpose.msra.mxu0 %v531
        %698 = vmatprep.subr.mxu0 0.0
        %699 = vmatpush1.xpose.msra.mxu0 %v534
        %700 = vmatprep.subr.mxu0 0.0
        %701 = vmatpush1.xpose.msra.mxu0 %v537
        %702 = vmatprep.subr.mxu0 0.0
        %703 = vmatpush1.xpose.msra.mxu0 %v540
        %704 = vmatprep.subr.mxu0 0.0
        %705 = vmatpush1.xpose.msra.mxu0 %v543
        %706 = vmatprep.subr.mxu0 0.0
        %707 = vmatpush1.xpose.msra.mxu0 %v546
        %708 = vmatprep.mubr.f32.mxu0 0.0
        %709 = vmatmul.mubr.f32.gmra.mrb[0].mxu0 %v441
        %v710 = vpop.f32.mrb[0].mxu0
        %v711 = vadd.f32 0.0, %v710
        %v712 = vpop.f32.mrb[0].mxu0
        %v713 = vadd.f32 0.0, %v712
        %714 = vmatprep.mubr.f32.mxu0 0.0
        %715 = vmatmul.mubr.f32.gmra.mrb[0].mxu0 %v444
        %v716 = vpop.f32.mrb[0].mxu0
        %v717 = vadd.f32 0.0, %v716
        %v718 = vpop.f32.mrb[0].mxu0
        %v719 = vadd.f32 0.0, %v718
        %720 = vmatprep.mubr.f32.mxu0 0.0
        %721 = vmatmul.mubr.f32.gmra.mrb[0].mxu0 %v447
        %v722 = vpop.f32.mrb[0].mxu0
        %v723 = vadd.f32 0.0, %v722
        %v724 = vpop.f32.mrb[0].mxu0
        %v725 = vadd.f32 0.0, %v724
        %726 = vmatprep.mubr.f32.mxu0 0.0
        %727 = vmatmul.mubr.f32.gmra.mrb[0].mxu0 %v450
        %v728 = vpop.f32.mrb[0].mxu0
        %v729 = vadd.f32 0.0, %v728
        %v730 = vpop.f32.mrb[0].mxu0
        %v731 = vadd.f32 0.0, %v730
        %732 = vdwg.mxu0
        %733 = vmatprep.subr.mxu0 0.0
        %734 = vmatpush1.xpose.msra.mxu0 %v549
        %735 = vmatprep.subr.mxu0 0.0
        %736 = vmatpush1.xpose.msra.mxu0 %v552
        %737 = vmatprep.subr.mxu0 0.0
        %738 = vmatpush1.xpose.msra.mxu0 %v555
        %739 = vmatprep.subr.mxu0 0.0
        %740 = vmatpush1.xpose.msra.mxu0 %v558
        %741 = vmatprep.subr.mxu0 0.0
        %742 = vmatpush1.xpose.msra.mxu0 %v561
        %743 = vmatprep.subr.mxu0 0.0
        %744 = vmatpush1.xpose.msra.mxu0 %v564
        %745 = vmatprep.subr.mxu0 0.0
        %746 = vmatpush1.xpose.msra.mxu0 %v567
        %747 = vmatprep.subr.mxu0 0.0
        %748 = vmatpush1.xpose.msra.mxu0 %v570
        %749 = vmatprep.subr.mxu0 0.0
        %750 = vmatpush1.xpose.msra.mxu0 %v573
        %751 = vmatprep.subr.mxu0 0.0
        %752 = vmatpush1.xpose.msra.mxu0 %v576
        %753 = vmatprep.subr.mxu0 0.0
        %754 = vmatpush1.xpose.msra.mxu0 %v579
        %755 = vmatprep.subr.mxu0 0.0
        %756 = vmatpush1.xpose.msra.mxu0 %v582
        %757 = vmatprep.subr.mxu0 0.0
        %758 = vmatpush1.xpose.msra.mxu0 %v585
        %759 = vmatprep.subr.mxu0 0.0
        %760 = vmatpush1.xpose.msra.mxu0 %v588
        %761 = vmatprep.subr.mxu0 0.0
        %762 = vmatpush1.xpose.msra.mxu0 %v591
        %763 = vmatprep.subr.mxu0 0.0
        %764 = vmatpush1.xpose.msra.mxu0 %v594
        %765 = vmatprep.subr.mxu0 0.0
        %766 = vmatpush1.xpose.msra.mxu0 %v597
        %767 = vmatprep.subr.mxu0 0.0
        %768 = vmatpush1.xpose.msra.mxu0 %v600
        %769 = vmatprep.subr.mxu0 0.0
        %770 = vmatpush1.xpose.msra.mxu0 %v603
        %771 = vmatprep.subr.mxu0 0.0
        %772 = vmatpush1.xpose.msra.mxu0 %v606
        %773 = vmatprep.subr.mxu0 0.0
        %774 = vmatpush1.xpose.msra.mxu0 %v609
        %775 = vmatprep.subr.mxu0 0.0
        %776 = vmatpush1.xpose.msra.mxu0 %v612
        %777 = vmatprep.subr.mxu0 0.0
        %778 = vmatpush1.xpose.msra.mxu0 %v615
        %779 = vmatprep.subr.mxu0 0.0
        %780 = vmatpush1.xpose.msra.mxu0 %v618
        %781 = vmatprep.subr.mxu0 0.0
        %782 = vmatpush1.xpose.msra.mxu0 %v621
        %783 = vmatprep.subr.mxu0 0.0
        %784 = vmatpush1.xpose.msra.mxu0 %v624
        %785 = vmatprep.subr.mxu0 0.0
        %786 = vmatpush1.xpose.msra.mxu0 %v627
        %787 = vmatprep.subr.mxu0 0.0
        %788 = vmatpush1.xpose.msra.mxu0 %v630
        %789 = vmatprep.subr.mxu0 0.0
        %790 = vmatpush1.xpose.msra.mxu0 %v633
        %791 = vmatprep.subr.mxu0 0.0
        %792 = vmatpush1.xpose.msra.mxu0 %v636
        %793 = vmatprep.subr.mxu0 0.0
        %794 = vmatpush1.xpose.msra.mxu0 %v639
        %795 = vmatprep.subr.mxu0 0.0
        %796 = vmatpush1.xpose.msra.mxu0 %v642
        %797 = vmatprep.mubr.f32.mxu0 0.0
        %798 = vmatmul.mubr.f32.gmra.mrb[0].mxu0 %v441
        %v799 = vpop.f32.mrb[0].mxu0
        %v800 = vadd.f32 0.0, %v799
        %v801 = vpop.f32.mrb[0].mxu0
        %v802 = vadd.f32 0.0, %v801
        %803 = vmatprep.mubr.f32.mxu0 0.0
        %804 = vmatmul.mubr.f32.gmra.mrb[0].mxu0 %v444
        %v805 = vpop.f32.mrb[0].mxu0
        %v806 = vadd.f32 0.0, %v805
        %v807 = vpop.f32.mrb[0].mxu0
        %v808 = vadd.f32 0.0, %v807
        %809 = vmatprep.mubr.f32.mxu0 0.0
        %810 = vmatmul.mubr.f32.gmra.mrb[0].mxu0 %v447
        %v811 = vpop.f32.mrb[0].mxu0
        %v812 = vadd.f32 0.0, %v811
        %v813 = vpop.f32.mrb[0].mxu0
        %v814 = vadd.f32 0.0, %v813
        %815 = vmatprep.mubr.f32.mxu0 0.0
        %816 = vmatmul.mubr.f32.gmra.mrb[0].mxu0 %v450
        %v817 = vpop.f32.mrb[0].mxu0
        %v818 = vadd.f32 0.0, %v817
        %v819 = vpop.f32.mrb[0].mxu0
        %v820 = vadd.f32 0.0, %v819
        %821 = vdwg.mxu0
        %vm822 = vcmask 130048
        %v824 = vsel %vm822, %v303, 0
        %v827 = vsel %vm822, %v304, 0
        %v830 = vsel %vm822, %v305, 0
        %v833 = vsel %vm822, %v306, 0
        %v836 = vsel %vm822, %v307, 0
        %v839 = vsel %vm822, %v308, 0
        %v842 = vsel %vm822, %v309, 0
        %v845 = vsel %vm822, %v310, 0
        %v848 = vsel %vm822, %v311, 0
        %v851 = vsel %vm822, %v312, 0
        %v854 = vsel %vm822, %v313, 0
        %v857 = vsel %vm822, %v314, 0
        %v860 = vsel %vm822, %v315, 0
        %v863 = vsel %vm822, %v316, 0
        %v866 = vsel %vm822, %v317, 0
        %v869 = vsel %vm822, %v318, 0
        %v872 = vsel %vm822, %v319, 0
        %v875 = vsel %vm822, %v320, 0
        %v878 = vsel %vm822, %v321, 0
        %v881 = vsel %vm822, %v322, 0
        %v884 = vsel %vm822, %v323, 0
        %v887 = vsel %vm822, %v324, 0
        %v890 = vsel %vm822, %v325, 0
        %v893 = vsel %vm822, %v326, 0
        %v896 = vsel %vm822, %v327, 0
        %v899 = vsel %vm822, %v328, 0
        %v902 = vsel %vm822, %v329, 0
        %v905 = vsel %vm822, %v330, 0
        %v908 = vsel %vm822, %v331, 0
        %v911 = vsel %vm822, %v332, 0
        %v914 = vsel %vm822, %v333, 0
        %v917 = vsel %vm822, %v334, 0
        %v920 = vsel %vm822, %v335, 0
        %v923 = vsel %vm822, %v336, 0
        %v926 = vsel %vm822, %v337, 0
        %v929 = vsel %vm822, %v338, 0
        %v932 = vsel %vm822, %v339, 0
        %v935 = vsel %vm822, %v340, 0
        %v938 = vsel %vm822, %v341, 0
        %v941 = vsel %vm822, %v342, 0
        %v944 = vsel %vm822, %v343, 0
        %v947 = vsel %vm822, %v344, 0
        %v950 = vsel %vm822, %v345, 0
        %v953 = vsel %vm822, %v346, 0
        %v956 = vsel %vm822, %v347, 0
        %v959 = vsel %vm822, %v348, 0
        %v962 = vsel %vm822, %v349, 0
        %v965 = vsel %vm822, %v350, 0
        %v968 = vsel %vm822, %v351, 0
        %v971 = vsel %vm822, %v352, 0
        %v974 = vsel %vm822, %v353, 0
        %v977 = vsel %vm822, %v354, 0
        %v980 = vsel %vm822, %v355, 0
        %v983 = vsel %vm822, %v356, 0
        %v986 = vsel %vm822, %v357, 0
        %v989 = vsel %vm822, %v358, 0
        %v992 = vsel %vm822, %v359, 0
        %v995 = vsel %vm822, %v360, 0
        %v998 = vsel %vm822, %v361, 0
        %v1001 = vsel %vm822, %v362, 0
        %v1004 = vsel %vm822, %v363, 0
        %v1007 = vsel %vm822, %v364, 0
        %v1010 = vsel %vm822, %v365, 0
        %v1013 = vsel %vm822, %v366, 0
        %v1016 = vsel %vm822, %v367, 0
        %v1019 = vsel %vm822, %v368, 0
        %v1022 = vsel %vm822, %v369, 0
        %v1025 = vsel %vm822, %v370, 0
        %1027 = vmatprep.subr.mxu0 0.0
        %1028 = vmatpush1.xpose.msra.mxu0 %v836
        %1029 = vmatprep.subr.mxu0 0.0
        %1030 = vmatpush1.xpose.msra.mxu0 %v839
        %1031 = vmatprep.subr.mxu0 0.0
        %1032 = vmatpush1.xpose.msra.mxu0 %v842
        %1033 = vmatprep.subr.mxu0 0.0
        %1034 = vmatpush1.xpose.msra.mxu0 %v845
        %1035 = vmatprep.subr.mxu0 0.0
        %1036 = vmatpush1.xpose.msra.mxu0 %v848
        %1037 = vmatprep.subr.mxu0 0.0
        %1038 = vmatpush1.xpose.msra.mxu0 %v851
        %1039 = vmatprep.subr.mxu0 0.0
        %1040 = vmatpush1.xpose.msra.mxu0 %v854
        %1041 = vmatprep.subr.mxu0 0.0
        %1042 = vmatpush1.xpose.msra.mxu0 %v857
        %1043 = vmatprep.subr.mxu0 0.0
        %1044 = vmatpush1.xpose.msra.mxu0 %v860
        %1045 = vmatprep.subr.mxu0 0.0
        %1046 = vmatpush1.xpose.msra.mxu0 %v863
        %1047 = vmatprep.subr.mxu0 0.0
        %1048 = vmatpush1.xpose.msra.mxu0 %v866
        %1049 = vmatprep.subr.mxu0 0.0
        %1050 = vmatpush1.xpose.msra.mxu0 %v869
        %1051 = vmatprep.subr.mxu0 0.0
        %1052 = vmatpush1.xpose.msra.mxu0 %v872
        %1053 = vmatprep.subr.mxu0 0.0
        %1054 = vmatpush1.xpose.msra.mxu0 %v875
        %1055 = vmatprep.subr.mxu0 0.0
        %1056 = vmatpush1.xpose.msra.mxu0 %v878
        %1057 = vmatprep.subr.mxu0 0.0
        %1058 = vmatpush1.xpose.msra.mxu0 %v881
        %1059 = vmatprep.subr.mxu0 0.0
        %1060 = vmatpush1.xpose.msra.mxu0 %v884
        %1061 = vmatprep.subr.mxu0 0.0
        %1062 = vmatpush1.xpose.msra.mxu0 %v887
        %1063 = vmatprep.subr.mxu0 0.0
        %1064 = vmatpush1.xpose.msra.mxu0 %v890
        %1065 = vmatprep.subr.mxu0 0.0
        %1066 = vmatpush1.xpose.msra.mxu0 %v893
        %1067 = vmatprep.subr.mxu0 0.0
        %1068 = vmatpush1.xpose.msra.mxu0 %v896
        %1069 = vmatprep.subr.mxu0 0.0
        %1070 = vmatpush1.xpose.msra.mxu0 %v899
        %1071 = vmatprep.subr.mxu0 0.0
        %1072 = vmatpush1.xpose.msra.mxu0 %v902
        %1073 = vmatprep.subr.mxu0 0.0
        %1074 = vmatpush1.xpose.msra.mxu0 %v905
        %1075 = vmatprep.subr.mxu0 0.0
        %1076 = vmatpush1.xpose.msra.mxu0 %v908
        %1077 = vmatprep.subr.mxu0 0.0
        %1078 = vmatpush1.xpose.msra.mxu0 %v911
        %1079 = vmatprep.subr.mxu0 0.0
        %1080 = vmatpush1.xpose.msra.mxu0 %v914
        %1081 = vmatprep.subr.mxu0 0.0
        %1082 = vmatpush1.xpose.msra.mxu0 %v917
        %1083 = vmatprep.subr.mxu0 0.0
        %1084 = vmatpush1.xpose.msra.mxu0 %v920
        %1085 = vmatprep.subr.mxu0 0.0
        %1086 = vmatpush1.xpose.msra.mxu0 %v923
        %1087 = vmatprep.subr.mxu0 0.0
        %1088 = vmatpush1.xpose.msra.mxu0 %v926
        %1089 = vmatprep.subr.mxu0 0.0
        %1090 = vmatpush1.xpose.msra.mxu0 %v929
        %1091 = vmatprep.mubr.f32.mxu0 0.0
        %1092 = vmatmul.mubr.f32.gmra.mrb[0].mxu0 %v824
        %v1093 = vpop.f32.mrb[0].mxu0
        %v1094 = vadd.f32 %v711, %v1093
        %v1095 = vpop.f32.mrb[0].mxu0
        %v1096 = vadd.f32 %v713, %v1095
        %1097 = vmatprep.mubr.f32.mxu0 0.0
        %1098 = vmatmul.mubr.f32.gmra.mrb[0].mxu0 %v827
        %v1099 = vpop.f32.mrb[0].mxu0
        %v1100 = vadd.f32 %v717, %v1099
        %v1101 = vpop.f32.mrb[0].mxu0
        %v1102 = vadd.f32 %v719, %v1101
        %1103 = vmatprep.mubr.f32.mxu0 0.0
        %1104 = vmatmul.mubr.f32.gmra.mrb[0].mxu0 %v830
        %v1105 = vpop.f32.mrb[0].mxu0
        %v1106 = vadd.f32 %v723, %v1105
        %v1107 = vpop.f32.mrb[0].mxu0
        %v1108 = vadd.f32 %v725, %v1107
        %1109 = vmatprep.mubr.f32.mxu0 0.0
        %1110 = vmatmul.mubr.f32.gmra.mrb[0].mxu0 %v833
        %v1111 = vpop.f32.mrb[0].mxu0
        %v1112 = vadd.f32 %v729, %v1111
        %v1113 = vpop.f32.mrb[0].mxu0
        %v1114 = vadd.f32 %v731, %v1113
        %1115 = vdwg.mxu0
        %1116 = vmatprep.subr.mxu0 0.0
        %1117 = vmatpush1.xpose.msra.mxu0 %v932
        %1118 = vmatprep.subr.mxu0 0.0
        %1119 = vmatpush1.xpose.msra.mxu0 %v935
        %1120 = vmatprep.subr.mxu0 0.0
        %1121 = vmatpush1.xpose.msra.mxu0 %v938
        %1122 = vmatprep.subr.mxu0 0.0
        %1123 = vmatpush1.xpose.msra.mxu0 %v941
        %1124 = vmatprep.subr.mxu0 0.0
        %1125 = vmatpush1.xpose.msra.mxu0 %v944
        %1126 = vmatprep.subr.mxu0 0.0
        %1127 = vmatpush1.xpose.msra.mxu0 %v947
        %1128 = vmatprep.subr.mxu0 0.0
        %1129 = vmatpush1.xpose.msra.mxu0 %v950
        %1130 = vmatprep.subr.mxu0 0.0
        %1131 = vmatpush1.xpose.msra.mxu0 %v953
        %1132 = vmatprep.subr.mxu0 0.0
        %1133 = vmatpush1.xpose.msra.mxu0 %v956
        %1134 = vmatprep.subr.mxu0 0.0
        %1135 = vmatpush1.xpose.msra.mxu0 %v959
        %1136 = vmatprep.subr.mxu0 0.0
        %1137 = vmatpush1.xpose.msra.mxu0 %v962
        %1138 = vmatprep.subr.mxu0 0.0
        %1139 = vmatpush1.xpose.msra.mxu0 %v965
        %1140 = vmatprep.subr.mxu0 0.0
        %1141 = vmatpush1.xpose.msra.mxu0 %v968
        %1142 = vmatprep.subr.mxu0 0.0
        %1143 = vmatpush1.xpose.msra.mxu0 %v971
        %1144 = vmatprep.subr.mxu0 0.0
        %1145 = vmatpush1.xpose.msra.mxu0 %v974
        %1146 = vmatprep.subr.mxu0 0.0
        %1147 = vmatpush1.xpose.msra.mxu0 %v977
        %1148 = vmatprep.subr.mxu0 0.0
        %1149 = vmatpush1.xpose.msra.mxu0 %v980
        %1150 = vmatprep.subr.mxu0 0.0
        %1151 = vmatpush1.xpose.msra.mxu0 %v983
        %1152 = vmatprep.subr.mxu0 0.0
        %1153 = vmatpush1.xpose.msra.mxu0 %v986
        %1154 = vmatprep.subr.mxu0 0.0
        %1155 = vmatpush1.xpose.msra.mxu0 %v989
        %1156 = vmatprep.subr.mxu0 0.0
        %1157 = vmatpush1.xpose.msra.mxu0 %v992
        %1158 = vmatprep.subr.mxu0 0.0
        %1159 = vmatpush1.xpose.msra.mxu0 %v995
        %1160 = vmatprep.subr.mxu0 0.0
        %1161 = vmatpush1.xpose.msra.mxu0 %v998
        %1162 = vmatprep.subr.mxu0 0.0
        %1163 = vmatpush1.xpose.msra.mxu0 %v1001
        %1164 = vmatprep.subr.mxu0 0.0
        %1165 = vmatpush1.xpose.msra.mxu0 %v1004
        %1166 = vmatprep.subr.mxu0 0.0
        %1167 = vmatpush1.xpose.msra.mxu0 %v1007
        %1168 = vmatprep.subr.mxu0 0.0
        %1169 = vmatpush1.xpose.msra.mxu0 %v1010
        %1170 = vmatprep.subr.mxu0 0.0
        %1171 = vmatpush1.xpose.msra.mxu0 %v1013
        %1172 = vmatprep.subr.mxu0 0.0
        %1173 = vmatpush1.xpose.msra.mxu0 %v1016
        %1174 = vmatprep.subr.mxu0 0.0
        %1175 = vmatpush1.xpose.msra.mxu0 %v1019
        %1176 = vmatprep.subr.mxu0 0.0
        %1177 = vmatpush1.xpose.msra.mxu0 %v1022
        %1178 = vmatprep.subr.mxu0 0.0
        %1179 = vmatpush1.xpose.msra.mxu0 %v1025
        %1180 = vmatprep.mubr.f32.mxu0 0.0
        %1181 = vmatmul.mubr.f32.gmra.mrb[0].mxu0 %v824
        %v1182 = vpop.f32.mrb[0].mxu0
        %v1183 = vadd.f32 %v800, %v1182
        %v1184 = vpop.f32.mrb[0].mxu0
        %v1185 = vadd.f32 %v802, %v1184
        %1186 = vmatprep.mubr.f32.mxu0 0.0
        %1187 = vmatmul.mubr.f32.gmra.mrb[0].mxu0 %v827
        %v1188 = vpop.f32.mrb[0].mxu0
        %v1189 = vadd.f32 %v806, %v1188
        %v1190 = vpop.f32.mrb[0].mxu0
        %v1191 = vadd.f32 %v808, %v1190
        %1192 = vmatprep.mubr.f32.mxu0 0.0
        %1193 = vmatmul.mubr.f32.gmra.mrb[0].mxu0 %v830
        %v1194 = vpop.f32.mrb[0].mxu0
        %v1195 = vadd.f32 %v812, %v1194
        %v1196 = vpop.f32.mrb[0].mxu0
        %v1197 = vadd.f32 %v814, %v1196
        %1198 = vmatprep.mubr.f32.mxu0 0.0
        %1199 = vmatmul.mubr.f32.gmra.mrb[0].mxu0 %v833
        %v1200 = vpop.f32.mrb[0].mxu0
        %v1201 = vadd.f32 %v818, %v1200
        %v1202 = vpop.f32.mrb[0].mxu0
        %v1203 = vadd.f32 %v820, %v1202
        %1204 = vdwg.mxu0
        %v1205 = vld [vmem:[%s4] sm:$0xff]
        %v1206 = vld [vmem:[%s4 + $0x8] sm:$0xff]
        %v1207 = vld [vmem:[%s4 + $0x10] sm:$0xff]
        %v1208 = vld [vmem:[%s4 + $0x18] sm:$0xff]
        %1210 = vset.pattern.permute.xlu0 0
        %1211 = vperm.xlu0 %1210, %v1205
        %v1212 = vpop.permute.xlu0 %1211
        %1215 = vset.pattern.permute.xlu0 0
        %1216 = vperm.xlu0 %1215, %v1206
        %v1217 = vpop.permute.xlu0 %1216
        %1220 = vset.pattern.permute.xlu0 0
        %1221 = vperm.xlu0 %1220, %v1207
        %v1222 = vpop.permute.xlu0 %1221
        %1225 = vset.pattern.permute.xlu0 0
        %1226 = vperm.xlu0 %1225, %v1208
        %v1227 = vpop.permute.xlu0 %1226
        %v1229 = vadd.f32 %v1094, %v1212
        %v1230 = vadd.f32 %v1096, %v1212
        %v1231 = vadd.f32 %v1183, %v1212
        %v1232 = vadd.f32 %v1185, %v1212
        %v1233 = vadd.f32 %v1100, %v1217
        %v1234 = vadd.f32 %v1102, %v1217
        %v1235 = vadd.f32 %v1189, %v1217
        %v1236 = vadd.f32 %v1191, %v1217
        %v1237 = vadd.f32 %v1106, %v1222
        %v1238 = vadd.f32 %v1108, %v1222
        %v1239 = vadd.f32 %v1195, %v1222
        %v1240 = vadd.f32 %v1197, %v1222
        %v1241 = vadd.f32 %v1112, %v1227
        %v1242 = vadd.f32 %v1114, %v1227
        %v1243 = vadd.f32 %v1201, %v1227
        %v1244 = vadd.f32 %v1203, %v1227
        %v1245 = vmax.f32 %v1229, 0.0
        %v1246 = vmax.f32 %v1230, 0.0
        %v1247 = vmax.f32 %v1231, 0.0
        %v1248 = vmax.f32 %v1232, 0.0
        %v1249 = vmax.f32 %v1233, 0.0
        %v1250 = vmax.f32 %v1234, 0.0
        %v1251 = vmax.f32 %v1235, 0.0
        %v1252 = vmax.f32 %v1236, 0.0
        %v1253 = vmax.f32 %v1237, 0.0
        %v1254 = vmax.f32 %v1238, 0.0
        %v1255 = vmax.f32 %v1239, 0.0
        %v1256 = vmax.f32 %v1240, 0.0
        %v1257 = vmax.f32 %v1241, 0.0
        %v1258 = vmax.f32 %v1242, 0.0
        %v1259 = vmax.f32 %v1243, 0.0
        %v1260 = vmax.f32 %v1244, 0.0
        %v1261 = vld [vmem:[%s5] sm:$0xff]
        %v1262 = vld [vmem:[%s5 + $0x8] sm:$0xff]
        %v1263 = vld [vmem:[%s5 + $0x10] sm:$0xff]
        %v1264 = vld [vmem:[%s5 + $0x18] sm:$0xff]
        %1266 = vset.pattern.permute.xlu0 0
        %1267 = vperm.xlu0 %1266, %v1261
        %v1268 = vpop.permute.xlu0 %1267
        %1271 = vset.pattern.permute.xlu0 0
        %1272 = vperm.xlu0 %1271, %v1262
        %v1273 = vpop.permute.xlu0 %1272
        %1276 = vset.pattern.permute.xlu0 0
        %1277 = vperm.xlu0 %1276, %v1263
        %v1278 = vpop.permute.xlu0 %1277
        %1281 = vset.pattern.permute.xlu0 0
        %1282 = vperm.xlu0 %1281, %v1264
        %v1283 = vpop.permute.xlu0 %1282
        %v1285 = vmul.f32 %v1245, %v1268
        %v1286 = vmul.f32 %v1246, %v1268
        %v1287 = vmul.f32 %v1247, %v1268
        %v1288 = vmul.f32 %v1248, %v1268
        %v1289 = vmul.f32 %v1249, %v1273
        %v1290 = vmul.f32 %v1250, %v1273
        %v1291 = vmul.f32 %v1251, %v1273
        %v1292 = vmul.f32 %v1252, %v1273
        %v1293 = vmul.f32 %v1253, %v1278
        %v1294 = vmul.f32 %v1254, %v1278
        %v1295 = vmul.f32 %v1255, %v1278
        %v1296 = vmul.f32 %v1256, %v1278
        %v1297 = vmul.f32 %v1257, %v1283
        %v1298 = vmul.f32 %v1258, %v1283
        %v1299 = vmul.f32 %v1259, %v1283
        %v1300 = vmul.f32 %v1260, %v1283
        %v1301 = vadd.f32 %v1285, %v1289
        %v1302 = vadd.f32 %v1301, %v1293
        %v1303 = vadd.f32 %v1302, %v1297
        %v1304 = vrot.slane %v1303, 4
        %v1305 = vadd.f32 %v1303, %v1304
        %v1306 = vrot.slane %v1305, 2
        %v1307 = vadd.f32 %v1305, %v1306
        %v1308 = vrot.slane %v1307, 1
        %v1309 = vadd.f32 %v1307, %v1308
        %v1310 = vadd.f32 %v1286, %v1290
        %v1311 = vadd.f32 %v1310, %v1294
        %v1312 = vadd.f32 %v1311, %v1298
        %v1313 = vrot.slane %v1312, 4
        %v1314 = vadd.f32 %v1312, %v1313
        %v1315 = vrot.slane %v1314, 2
        %v1316 = vadd.f32 %v1314, %v1315
        %v1317 = vrot.slane %v1316, 1
        %v1318 = vadd.f32 %v1316, %v1317
        %v1319 = vadd.f32 %v1287, %v1291
        %v1320 = vadd.f32 %v1319, %v1295
        %v1321 = vadd.f32 %v1320, %v1299
        %v1322 = vrot.slane %v1321, 4
        %v1323 = vadd.f32 %v1321, %v1322
        %v1324 = vrot.slane %v1323, 2
        %v1325 = vadd.f32 %v1323, %v1324
        %v1326 = vrot.slane %v1325, 1
        %v1327 = vadd.f32 %v1325, %v1326
        %v1328 = vadd.f32 %v1288, %v1292
        %v1329 = vadd.f32 %v1328, %v1296
        %v1330 = vadd.f32 %v1329, %v1300
        %v1331 = vrot.slane %v1330, 4
        %v1332 = vadd.f32 %v1330, %v1331
        %v1333 = vrot.slane %v1332, 2
        %v1334 = vadd.f32 %v1332, %v1333
        %v1335 = vrot.slane %v1334, 1
        %v1336 = vadd.f32 %v1334, %v1335
        %s1337 = sld [smem:[#allocation2]]
        %v1338 = vstv %s1337
        %v1339 = vadd.f32 %v1309, %v1338
        %v1340 = vadd.f32 %v1318, %v1338
        %v1341 = vadd.f32 %v1327, %v1338
        %v1342 = vadd.f32 %v1336, %v1338
        %v1347 = vcombine.low %v1339, %v1340
        %v1348 = vcombine.low %v1341, %v1342
        %v1350 = vunpack.c.l.s4 1966171168
        %v1351 = vunpack.c.0.s8 %v1350
        %v1352 = vlaneseq
        %v1353 = vshrl.u32 %v1352, 7
        %v1354 = vsub.s32 %v1351, %v1353
        %v1355 = vrot.slane %v1347, %v1354
        %v1357 = vunpack.c.l.s4 1966171168
        %v1358 = vunpack.c.0.s8 %v1357
        %v1359 = vlaneseq
        %v1360 = vshrl.u32 %v1359, 7
        %v1361 = vsub.s32 %v1358, %v1360
        %v1362 = vrot.slane %v1348, %v1361
        %v1363 = vcombine.low %v1355, %v1362
        %v1365 = vunpack.c.l.s4 1966171168
        %v1366 = vunpack.c.0.s8 %v1365
        %v1367 = vlaneseq
        %v1368 = vshrl.u32 %v1367, 7
        %v1369 = vsub.s32 %v1366, %v1368
        %v1370 = vrot.slane %v1363, %v1369
        %v1372 = vlaneseq
        %vm1373 = vcmp.ge.s32.totalorder %v1372, 0
        %vm1374 = vcmp.lt.s32.totalorder %v1372, 512
        %vm1375 = vmand %vm1373, %vm1374
        %1376 = vst.msk [vmem:[%s289] sm:$0xf] %vm1375, %v1370
        %s1377 = sand.u32 %s187, 1
        %s1378 = scalar_lea.sflag [#allocation4], %s1377
        %s1379 = sand.u32 %s187, 1
        %s1380 = smul.addr %s1379, 4
        %s1381 = scalar_lea.vmem [#allocation3], %s1380
        // Predicated region
        $region49: #{aaf_fruits_forward.1} parent=47 // pred_check
          %p1382 = pneg %p197
        $region50: #{aaf_fruits_forward.1} parent=47 // pred_check_branch
          %1384 = sbr.rel (%p1382) target = $region52
        $region51: #{aaf_fruits_forward.1} parent=47 // pred_region
          %s1385 = smul.u32 4, %s22
          %s1387 = ssub.s32 64, 64
          %1388 = vsyncadd %s1378, %s1387
          %s1389 = smul.addr %s1385, 16
          %s1390 = scalar_lea.hbm %s7, %s1389
          %s1392 = sshll.u32 %s1381, 4
          %s1393 = int_to_ptr.vmem [resolvable:$true] %s1392
          %1395 = dma.vmem_to_hbm [thread:$0]  %s1393, 64, %s1390, %s1378
        $region52: #{aaf_fruits_forward.1} parent=47 // pred_fallthru
          _
      $region48: #{aaf_fruits_forward.1} parent=5 // pred_fallthru
        _
      %p1396 = scmp.le.s32.totalorder 2, %s17
      // Predicated region
      $region53: #{aaf_fruits_forward.1} parent=5 // pred_check
        %p1397 = pneg %p1396
      $region54: #{aaf_fruits_forward.1} parent=5 // pred_check_branch
        %1399 = sbr.rel (%p1397) target = $region56
      $region55: #{aaf_fruits_forward.1} parent=5 // pred_region
        %s1400 = ssub.s32 %s17, 2
        // Predicated region
        $region57: #{aaf_fruits_forward.1} parent=55 // pred_check
          %p1401 = pneg %p203
        $region58: #{aaf_fruits_forward.1} parent=55 // pred_check_branch
          %1403 = sbr.rel (%p1401) target = $region60
        $region59: #{aaf_fruits_forward.1} parent=55 // pred_region
          %s1404 = sand.u32 %s188, 1
          %s1405 = scalar_lea.sflag [#allocation4], %s1404
          %s1406 = sand.u32 %s188, 1
          %s1407 = smul.addr %s1406, 4
          %s1408 = scalar_lea.vmem [#allocation3], %s1407
          %1409 = dma.done %s1405, 64
        $region60: #{aaf_fruits_forward.1} parent=55 // pred_fallthru
          _
      $region56: #{aaf_fruits_forward.1} parent=5 // pred_fallthru
        _
    $region6: #{aaf_fruits_forward.1} parent=1 // loop_footer
      %s21 = sadd.s32 1, %s17
    $region7: #{aaf_fruits_forward.1} parent=1 // loop_footer_branch
      %16 = sbr.rel target = $region3
    $region8: #{aaf_fruits_forward.1} parent=1 // loop_exit
      _
    %1410 = vsyncpa [#allocation4], 1
    %s1411 = scalar_lea.sflag [#allocation4], 1
    %1412 = vsyncpa %s1411, 1

</llo_original>
